<compile_context>
chip_gen: v6e
topology: v6e:2x2x1
jax: 0.10.0
libtpu: 0.0.40
codegen_flags: <defaults>
</compile_context>

<pallas_src>
import functools

import jax
import jax.numpy as jnp
from jax.experimental import pallas as pl
from jax.experimental.pallas import tpu as pltpu

LANE = 128            # TPU lane width: hidden/output feature dims pad to this.
_MIN_SPLIT_ROWS = 1024  # split the batch across >=2 grid steps past this point
                        # (keeps both v7x TensorCores busy, tiles stay >=512).


def _round_up(x, m):
    return (x + m - 1) // m * m


def _pad2(a, rows, cols):
    """Zero-pad a 2-D array up to (rows, cols)."""
    return jnp.pad(a, ((0, rows - a.shape[0]), (0, cols - a.shape[1])))


def _batch_tiling(batch, tm):
    """Pick (tile_rows, n_steps): balanced tiles, multiples of 8 sublanes."""
    rounded = _round_up(batch, 8)
    if rounded <= tm and rounded < _MIN_SPLIT_ROWS:
        return rounded, 1
    n_steps = max(2, pl.cdiv(rounded, tm))
    tm_eff = _round_up(pl.cdiv(rounded, n_steps), 8)
    return tm_eff, n_steps


def mlp_kernel(x_ref, w1_ref, b1_ref, w2_ref, b2_ref, w3_ref, b3_ref, o_ref):
    # Layer 1: bf16 MXU matmul -> f32 accumulator; bias + ReLU on the VPU.
    h1 = jnp.dot(x_ref[...], w1_ref[...], preferred_element_type=jnp.float32)
    h1 = jnp.maximum(h1 + b1_ref[...], 0.0)
    # Layers 2/3: cast activations back to bf16 so the MXU stays on its native
    # bf16 path; keep f32 accumulation and f32 bias/ReLU.
    h2 = jnp.dot(h1.astype(jnp.bfloat16), w2_ref[...],
                 preferred_element_type=jnp.float32)
    h2 = jnp.maximum(h2 + b2_ref[...], 0.0)
    out = jnp.dot(h2.astype(jnp.bfloat16), w3_ref[...],
                  preferred_element_type=jnp.float32)
    o_ref[...] = (out + b3_ref[...]).astype(o_ref.dtype)
    # Note: if bundle dumps ever show vld/vst spill pressure at TM >= 1024,
    # chunk this body with lax.fori_loop(..., unroll=True) over 256-row
    # sub-blocks while keeping the large DMA tile.


@functools.partial(jax.jit, static_argnames=("tm",))
def mlp_forward(x, w1, b1, w2, b2, w3, b3, tm=1024):
    batch, n_in = x.shape
    n_hid = w1.shape[1]
    n_out = w3.shape[1]

    p_in = _round_up(n_in, 16)     # one packed bf16 sublane tile for layer-1 K
    p_hid = _round_up(n_hid, LANE)  # lane-dense hidden width
    p_out = _round_up(n_out, LANE)  # lane-dense output (avoids masked vst.msk)

    tm_eff, n_steps = _batch_tiling(batch, tm)
    p_batch = tm_eff * n_steps

    # bf16 streamed/resident matmul operands; biases stay f32 (added on the
    # f32 accumulator in-kernel). The only wrapper-side padding of x is to
    # (p_batch, 16) bf16 — negligible next to the kernel's own HBM traffic.
    x_p = _pad2(x.astype(jnp.bfloat16), p_batch, p_in)
    w1_p = _pad2(w1.astype(jnp.bfloat16), p_in, p_hid)
    w2_p = _pad2(w2.astype(jnp.bfloat16), p_hid, p_hid)
    w3_p = _pad2(w3.astype(jnp.bfloat16), p_hid, p_out)
    b1_p = _pad2(b1.astype(jnp.float32).reshape(1, -1), 1, p_hid)
    b2_p = _pad2(b2.astype(jnp.float32).reshape(1, -1), 1, p_hid)
    b3_p = _pad2(b3.astype(jnp.float32).reshape(1, -1), 1, p_out)

    resident = lambda i: (0, 0)   # weights/biases: same block every grid step

    out_pad = pl.pallas_call(
        mlp_kernel,
        out_shape=jax.ShapeDtypeStruct((p_batch, p_out), jnp.float32),
        grid=(n_steps,),
        in_specs=[
            pl.BlockSpec((tm_eff, p_in), lambda i: (i, 0)),   # streamed x tile
            pl.BlockSpec((p_in, p_hid), resident),            # W1 (resident)
            pl.BlockSpec((1, p_hid), resident),               # b1
            pl.BlockSpec((p_hid, p_hid), resident),           # W2
            pl.BlockSpec((1, p_hid), resident),               # b2
            pl.BlockSpec((p_hid, p_out), resident),           # W3
            pl.BlockSpec((1, p_out), resident),               # b3
        ],
        out_specs=pl.BlockSpec((tm_eff, p_out), lambda i: (i, 0)),
        compiler_params=pltpu.CompilerParams(
            dimension_semantics=("parallel",),      # shard batch over v7x TCs
            vmem_limit_bytes=32 * 1024 * 1024,      # lift v5e's 16 MiB default
        ),
    )(x_p, w1_p, b1_p, w2_p, b2_p, w3_p, b3_p)

    # Slice away batch/output padding outside the kernel (negligible).
    return out_pad[:batch, :n_out]


def init_params(key, n_in, n_hid, n_out):
    # PyTorch MLP.init_weights(): every parameter ~ Normal(0, 1).
    ks = jax.random.split(key, 6)
    w1 = jax.random.normal(ks[0], (n_in, n_hid), jnp.float32)
    b1 = jax.random.normal(ks[1], (1, n_hid), jnp.float32)
    w2 = jax.random.normal(ks[2], (n_hid, n_hid), jnp.float32)
    b2 = jax.random.normal(ks[3], (1, n_hid), jnp.float32)
    w3 = jax.random.normal(ks[4], (n_hid, n_out), jnp.float32)
    b3 = jax.random.normal(ks[5], (1, n_out), jnp.float32)
    return w1, b1, w2, b2, w3, b3


def reference_forward(x, w1, b1, w2, b2, w3, b3):
    """Pure-f32 reference of the PyTorch module (semantics)."""
    h1 = jnp.maximum(x @ w1 + b1, 0.0)
    h2 = jnp.maximum(h1 @ w2 + b2, 0.0)
    return h2 @ w3 + b3


def reference_forward_mixed(x, w1, b1, w2, b2, w3, b3):
    """Same forward pass with the kernel's mixed precision:
    bf16 matmul operands, f32 accumulation, f32 bias + ReLU."""
    bf, f32 = jnp.bfloat16, jnp.float32
    r = lambda a: a.astype(bf).astype(f32)
    h1 = jnp.maximum(r(x) @ r(w1) + b1, 0.0)
    h2 = jnp.maximum(r(h1) @ r(w2) + b2, 0.0)
    return r(h2) @ r(w3) + b3


if __name__ == "__main__":
    # CartPole-ish sizes: obs dim 4, hidden 32, 2 actions.
    n_in, n_hid, n_out = 4, 32, 2

    key = jax.random.PRNGKey(0)
    kx, kp, kx2 = jax.random.split(key, 3)
    params = init_params(kp, n_in, n_hid, n_out)

    # Small batch (single grid step).
    x = jax.random.normal(kx, (8, n_in), jnp.float32)
    out = jax.block_until_ready(mlp_forward(x, *params))
    ref = reference_forward_mixed(x, *params)
    assert out.shape == (8, n_out)
    assert jnp.allclose(out, ref, atol=1e-2, rtol=1e-2)

    # Larger batch exercising the batch padding path (300 not a multiple of 8).
    x2 = jax.random.normal(kx2, (300, n_in), jnp.float32)
    out2 = jax.block_until_ready(mlp_forward(x2, *params))
    ref2 = reference_forward_mixed(x2, *params)
    assert out2.shape == (300, n_out)
    assert jnp.allclose(out2, ref2, atol=1e-2, rtol=1e-2)

    print("KERNEL_OK")
</pallas_src>

<mosaic_0001>
module attributes {stable_mosaic.version = 11 : i64} {
  func.func @mlp_kernel(%arg0: i32, %arg1: memref<8x16xbf16, #tpu.memory_space<vmem>>, %arg2: memref<16x128xbf16, #tpu.memory_space<vmem>>, %arg3: memref<1x128xf32, #tpu.memory_space<vmem>>, %arg4: memref<128x128xbf16, #tpu.memory_space<vmem>>, %arg5: memref<1x128xf32, #tpu.memory_space<vmem>>, %arg6: memref<128x128xbf16, #tpu.memory_space<vmem>>, %arg7: memref<1x128xf32, #tpu.memory_space<vmem>>, %arg8: memref<8x128xf32, #tpu.memory_space<vmem>>) attributes {dimension_semantics = [#tpu.dimension_semantics<parallel>], iteration_bounds = array<i64: 1>, scalar_prefetch = 0 : i64, scratch_operands = 0 : i64, tpu.core_type = #tpu.core_type<tc>, window_params = [{transform_indices = @transform_0, window_bounds = array<i64: 8, 16>}, {pipeline_mode = #tpu.pipeline_mode<synchronous>, transform_indices = @transform_1, window_bounds = array<i64: 16, 128>}, {pipeline_mode = #tpu.pipeline_mode<synchronous>, transform_indices = @transform_2, window_bounds = array<i64: 1, 128>}, {pipeline_mode = #tpu.pipeline_mode<synchronous>, transform_indices = @transform_3, window_bounds = array<i64: 128, 128>}, {pipeline_mode = #tpu.pipeline_mode<synchronous>, transform_indices = @transform_4, window_bounds = array<i64: 1, 128>}, {pipeline_mode = #tpu.pipeline_mode<synchronous>, transform_indices = @transform_5, window_bounds = array<i64: 128, 128>}, {pipeline_mode = #tpu.pipeline_mode<synchronous>, transform_indices = @transform_6, window_bounds = array<i64: 1, 128>}, {transform_indices = @transform_7, window_bounds = array<i64: 8, 128>}]} {
    %c0 = arith.constant 0 : index
    %c0_0 = arith.constant 0 : index
    %0 = vector.load %arg1[%c0, %c0_0] : memref<8x16xbf16, #tpu.memory_space<vmem>>, vector<8x16xbf16>
    %c0_1 = arith.constant 0 : index
    %c0_2 = arith.constant 0 : index
    %1 = vector.load %arg2[%c0_1, %c0_2] : memref<16x128xbf16, #tpu.memory_space<vmem>>, vector<16x128xbf16>
    %cst = arith.constant dense<0.000000e+00> : vector<8x128xf32>
    %2 = tpu.matmul %0, %1, %cst {dimension_numbers = #tpu.dot_dimension_numbers<[1], [0], [0], [1], [0, 0, 1, 1], [], []>} : vector<8x16xbf16>, vector<16x128xbf16>, vector<8x128xf32> -> vector<8x128xf32>
    %c0_3 = arith.constant 0 : index
    %c0_4 = arith.constant 0 : index
    %3 = vector.load %arg3[%c0_3, %c0_4] : memref<1x128xf32, #tpu.memory_space<vmem>>, vector<1x128xf32>
    %4 = vector.broadcast %3 : vector<1x128xf32> to vector<8x128xf32>
    %5 = arith.addf %2, %4 : vector<8x128xf32>
    %cst_5 = arith.constant 0.000000e+00 : f32
    %6 = vector.broadcast %cst_5 : f32 to vector<8x128xf32>
    %7 = arith.maximumf %5, %6 : vector<8x128xf32>
    %8 = arith.truncf %7 : vector<8x128xf32> to vector<8x128xbf16>
    %c0_6 = arith.constant 0 : index
    %c0_7 = arith.constant 0 : index
    %9 = vector.load %arg4[%c0_6, %c0_7] : memref<128x128xbf16, #tpu.memory_space<vmem>>, vector<128x128xbf16>
    %cst_8 = arith.constant dense<0.000000e+00> : vector<8x128xf32>
    %10 = tpu.matmul %8, %9, %cst_8 {dimension_numbers = #tpu.dot_dimension_numbers<[1], [0], [0], [1], [0, 0, 1, 1], [], []>} : vector<8x128xbf16>, vector<128x128xbf16>, vector<8x128xf32> -> vector<8x128xf32>
    %c0_9 = arith.constant 0 : index
    %c0_10 = arith.constant 0 : index
    %11 = vector.load %arg5[%c0_9, %c0_10] : memref<1x128xf32, #tpu.memory_space<vmem>>, vector<1x128xf32>
    %12 = vector.broadcast %11 : vector<1x128xf32> to vector<8x128xf32>
    %13 = arith.addf %10, %12 : vector<8x128xf32>
    %cst_11 = arith.constant 0.000000e+00 : f32
    %14 = vector.broadcast %cst_11 : f32 to vector<8x128xf32>
    %15 = arith.maximumf %13, %14 : vector<8x128xf32>
    %16 = arith.truncf %15 : vector<8x128xf32> to vector<8x128xbf16>
    %c0_12 = arith.constant 0 : index
    %c0_13 = arith.constant 0 : index
    %17 = vector.load %arg6[%c0_12, %c0_13] : memref<128x128xbf16, #tpu.memory_space<vmem>>, vector<128x128xbf16>
    %cst_14 = arith.constant dense<0.000000e+00> : vector<8x128xf32>
    %18 = tpu.matmul %16, %17, %cst_14 {dimension_numbers = #tpu.dot_dimension_numbers<[1], [0], [0], [1], [0, 0, 1, 1], [], []>} : vector<8x128xbf16>, vector<128x128xbf16>, vector<8x128xf32> -> vector<8x128xf32>
    %c0_15 = arith.constant 0 : index
    %c0_16 = arith.constant 0 : index
    %19 = vector.load %arg7[%c0_15, %c0_16] : memref<1x128xf32, #tpu.memory_space<vmem>>, vector<1x128xf32>
    %20 = vector.broadcast %19 : vector<1x128xf32> to vector<8x128xf32>
    %21 = arith.addf %18, %20 : vector<8x128xf32>
    %c0_17 = arith.constant 0 : index
    %c0_18 = arith.constant 0 : index
    %22 = vector.load %arg8[%c0_17, %c0_18] : memref<8x128xf32, #tpu.memory_space<vmem>>, vector<8x128xf32>
    tpu.vector_store %arg8[%c0_17, %c0_18], %21 {strides = array<i32>} : memref<8x128xf32, #tpu.memory_space<vmem>>, vector<8x128xf32>,
    return
  }
  func.func @transform_0(%arg0: i32) -> (i32, i32) {
    %c0_i32 = arith.constant 0 : i32
    %c0_i32_0 = arith.constant 0 : i32
    return %arg0, %c0_i32 : i32, i32
  }
  func.func @transform_1(%arg0: i32) -> (i32, i32) {
    %c0_i32 = arith.constant 0 : i32
    %c0_i32_0 = arith.constant 0 : i32
    %c0_i32_1 = arith.constant 0 : i32
    return %c0_i32, %c0_i32_0 : i32, i32
  }
  func.func @transform_2(%arg0: i32) -> (i32, i32) {
    %c0_i32 = arith.constant 0 : i32
    %c0_i32_0 = arith.constant 0 : i32
    %c0_i32_1 = arith.constant 0 : i32
    return %c0_i32, %c0_i32_0 : i32, i32
  }
  func.func @transform_3(%arg0: i32) -> (i32, i32) {
    %c0_i32 = arith.constant 0 : i32
    %c0_i32_0 = arith.constant 0 : i32
    %c0_i32_1 = arith.constant 0 : i32
    return %c0_i32, %c0_i32_0 : i32, i32
  }
  func.func @transform_4(%arg0: i32) -> (i32, i32) {
    %c0_i32 = arith.constant 0 : i32
    %c0_i32_0 = arith.constant 0 : i32
    %c0_i32_1 = arith.constant 0 : i32
    return %c0_i32, %c0_i32_0 : i32, i32
  }
  func.func @transform_5(%arg0: i32) -> (i32, i32) {
    %c0_i32 = arith.constant 0 : i32
    %c0_i32_0 = arith.constant 0 : i32
    %c0_i32_1 = arith.constant 0 : i32
    return %c0_i32, %c0_i32_0 : i32, i32
  }
  func.func @transform_6(%arg0: i32) -> (i32, i32) {
    %c0_i32 = arith.constant 0 : i32
    %c0_i32_0 = arith.constant 0 : i32
    %c0_i32_1 = arith.constant 0 : i32
    return %c0_i32, %c0_i32_0 : i32, i32
  }
  func.func @transform_7(%arg0: i32) -> (i32, i32) {
    %c0_i32 = arith.constant 0 : i32
    %c0_i32_0 = arith.constant 0 : i32
    return %arg0, %c0_i32 : i32, i32
  }
}

</mosaic_0001>

<llo_original>
// kernel: mlp_forward.1
$region0: #{mlp_forward.1}
  #allocation0 [shape = 'u32[]', space=smem, size = 0x4, offset = 0x4, fixed_abs, tag = 'smem constant byte address 0x4 - core index']
  #allocation1 [shape = 'u32[144,128]{1,0:T(1,128)}', space=vmem, size = 0x12000, scoped, tag = 'internal scratch']
  %s0 = inlined_call_operand.vmem [shape: bf16[8,16], index: 0, kind: input, shape index: {}]
  %s1 = inlined_call_operand.vmem [shape: bf16[16,128], index: 1, kind: input, shape index: {}]
  %s2 = inlined_call_operand.vmem [shape: f32[1,128], index: 2, kind: input, shape index: {}]
  %s3 = inlined_call_operand.vmem [shape: bf16[128,128], index: 3, kind: input, shape index: {}]
  %s4 = inlined_call_operand.vmem [shape: f32[1,128], index: 4, kind: input, shape index: {}]
  %s5 = inlined_call_operand.vmem [shape: bf16[128,128], index: 5, kind: input, shape index: {}]
  %s6 = inlined_call_operand.vmem [shape: f32[1,128], index: 6, kind: input, shape index: {}]
  %s7 = inlined_call_operand.vmem [shape: f32[8,128], index: 7, kind: output, shape index: {}]
  %s8 = sld [smem:[#allocation0]]
  $region38: #{mlp_forward.1} parent=0
    _
  %s10 = ssub.s32 1, %s8
  %s11 = scalar_select 0, %s10, %s8
  // Predicated region
  $region2: #{mlp_forward.1} parent=0 // pred_check
    _
  $region3: #{mlp_forward.1} parent=0 // pred_check_branch
    %13 = sbr.rel (0) target = $region5
  $region4: #{mlp_forward.1} parent=0 // pred_region
    _
  $region5: #{mlp_forward.1} parent=0 // pred_fallthru
    _
  // Predicated region
  $region6: #{mlp_forward.1} parent=0 // pred_check
    _
  $region7: #{mlp_forward.1} parent=0 // pred_check_branch
    %15 = sbr.rel (0) target = $region9
  $region8: #{mlp_forward.1} parent=0 // pred_region
    _
  $region9: #{mlp_forward.1} parent=0 // pred_fallthru
    _
  // Predicated region
  $region10: #{mlp_forward.1} parent=0 // pred_check
    _
  $region11: #{mlp_forward.1} parent=0 // pred_check_branch
    %17 = sbr.rel (0) target = $region13
  $region12: #{mlp_forward.1} parent=0 // pred_region
    _
  $region13: #{mlp_forward.1} parent=0 // pred_fallthru
    _
  // Predicated region
  $region14: #{mlp_forward.1} parent=0 // pred_check
    _
  $region15: #{mlp_forward.1} parent=0 // pred_check_branch
    %19 = sbr.rel (0) target = $region17
  $region16: #{mlp_forward.1} parent=0 // pred_region
    _
  $region17: #{mlp_forward.1} parent=0 // pred_fallthru
    _
  // Predicated region
  $region18: #{mlp_forward.1} parent=0 // pred_check
    _
  $region19: #{mlp_forward.1} parent=0 // pred_check_branch
    %21 = sbr.rel (0) target = $region21
  $region20: #{mlp_forward.1} parent=0 // pred_region
    _
  $region21: #{mlp_forward.1} parent=0 // pred_fallthru
    _
  // Predicated region
  $region22: #{mlp_forward.1} parent=0 // pred_check
    _
  $region23: #{mlp_forward.1} parent=0 // pred_check_branch
    %23 = sbr.rel (0) target = $region25
  $region24: #{mlp_forward.1} parent=0 // pred_region
    _
  $region25: #{mlp_forward.1} parent=0 // pred_fallthru
    _
  // Predicated region
  $region26: #{mlp_forward.1} parent=0 // pred_check
    _
  $region27: #{mlp_forward.1} parent=0 // pred_check_branch
    %25 = sbr.rel (0) target = $region29
  $region28: #{mlp_forward.1} parent=0 // pred_region
    _
  $region29: #{mlp_forward.1} parent=0 // pred_fallthru
    _
  %v27 = vld [vmem:[%s0] sm:$0xf]
  %v28 = vld [vmem:[%s1] sm:$0xf]
  %v29 = vld [vmem:[%s1 + $0x4] sm:$0xf]
  %v30 = vld [vmem:[%s2] sm:$0x1]
  %v32 = vlaneseq
  %v33 = vshrl.u32 %v32, 7
  %v34 = vsub.s32 0, %v33
  %v35 = vrot.slane %v30, %v34
  %v39 = vunpack.c.l.b16 %v28
  %v40 = vunpack.c.l.b16 %v29
  %v41 = vpack.c.b16 %v40, %v39
  %vm43 = vcmask 130048
  %v45 = vsel %vm43, %v27, 0
  %47 = vmatprep.subr.bf16.mxu0 0
  %48 = vmatpush1.bf16.msra.mxu0 0
  %49 = vmatprep.subr.bf16.mxu0 0
  %50 = vmatpush1.bf16.msra.mxu0 0
  %51 = vmatprep.subr.bf16.mxu0 0
  %52 = vmatpush1.bf16.msra.mxu0 0
  %53 = vmatprep.subr.bf16.mxu0 0
  %54 = vmatpush1.bf16.msra.mxu0 0
  %55 = vmatprep.subr.bf16.mxu0 0
  %56 = vmatpush1.bf16.msra.mxu0 0
  %57 = vmatprep.subr.bf16.mxu0 0
  %58 = vmatpush1.bf16.msra.mxu0 0
  %59 = vmatprep.subr.bf16.mxu0 0
  %60 = vmatpush1.bf16.msra.mxu0 0
  %61 = vmatprep.subr.bf16.mxu0 0
  %62 = vmatpush1.bf16.msra.mxu0 %v41
  %63 = vmatprep.subr.bf16.mxu0 0
  %64 = vmatpush2.bf16.msra.mxu0 0
  %65 = vmatprep.subr.bf16.mxu0 0
  %66 = vmatpush2.bf16.msra.mxu0 0
  %67 = vmatprep.subr.bf16.mxu0 0
  %68 = vmatpush2.bf16.msra.mxu0 0
  %69 = vmatprep.subr.bf16.mxu0 0
  %70 = vmatpush2.bf16.msra.mxu0 0
  %71 = vmatprep.subr.bf16.mxu0 0
  %72 = vmatpush2.bf16.msra.mxu0 0
  %73 = vmatprep.subr.bf16.mxu0 0
  %74 = vmatpush2.bf16.msra.mxu0 0
  %75 = vmatprep.subr.bf16.mxu0 0
  %76 = vmatpush2.bf16.msra.mxu0 0
  %77 = vmatprep.subr.bf16.mxu0 0
  %78 = vmatpush2.bf16.msra.mxu0 0
  %79 = vmatprep.mubr.bf16.mxu0 0
  %80 = vmatmul.mubr.bf16.gmra.mxu0 %v45
  %v81 = vpop.f32.mrf.mxu0
  %v82 = vadd.f32 %v35, %v81
  %v83 = vpop.f32.mrf.mxu0
  %v84 = vpop.f32.mrf.mxu0
  %v85 = vpop.f32.mrf.mxu0
  %86 = vdwg.mxu0
  %v87 = vmax.f32 %v82, 0.0
  %v88 = vpack.c.bf16 %v87, %v87
  %v89 = vld [vmem:[%s3] sm:$0xf]
  %v90 = vld [vmem:[%s3 + $0x4] sm:$0xf]
  %v91 = vld [vmem:[%s3 + $0x8] sm:$0xf]
  %v92 = vld [vmem:[%s3 + $0xc] sm:$0xf]
  %v93 = vld [vmem:[%s3 + $0x10] sm:$0xf]
  %v94 = vld [vmem:[%s3 + $0x14] sm:$0xf]
  %v95 = vld [vmem:[%s3 + $0x18] sm:$0xf]
  %v96 = vld [vmem:[%s3 + $0x1c] sm:$0xf]
  %v97 = vld [vmem:[%s3 + $0x20] sm:$0xf]
  %v98 = vld [vmem:[%s3 + $0x24] sm:$0xf]
  %v99 = vld [vmem:[%s3 + $0x28] sm:$0xf]
  %v100 = vld [vmem:[%s3 + $0x2c] sm:$0xf]
  %v101 = vld [vmem:[%s3 + $0x30] sm:$0xf]
  %v102 = vld [vmem:[%s3 + $0x34] sm:$0xf]
  %v103 = vld [vmem:[%s3 + $0x38] sm:$0xf]
  %v104 = vld [vmem:[%s3 + $0x3c] sm:$0xf]
  %v105 = vld [vmem:[%s4] sm:$0x1]
  %v107 = vlaneseq
  %v108 = vshrl.u32 %v107, 7
  %v109 = vsub.s32 0, %v108
  %v110 = vrot.slane %v105, %v109
  %v128 = vunpack.c.l.b16 %v89
  %v129 = vunpack.c.l.b16 %v90
  %v130 = vunpack.c.l.b16 %v91
  %v131 = vunpack.c.l.b16 %v92
  %v132 = vunpack.c.l.b16 %v93
  %v133 = vunpack.c.l.b16 %v94
  %v134 = vunpack.c.l.b16 %v95
  %v135 = vunpack.c.l.b16 %v96
  %v136 = vunpack.c.l.b16 %v97
  %v137 = vunpack.c.l.b16 %v98
  %v138 = vunpack.c.l.b16 %v99
  %v139 = vunpack.c.l.b16 %v100
  %v140 = vunpack.c.l.b16 %v101
  %v141 = vunpack.c.l.b16 %v102
  %v142 = vunpack.c.l.b16 %v103
  %v143 = vunpack.c.l.b16 %v104
  %v144 = vpack.c.b16 %v129, %v128
  %v145 = vpack.c.b16 %v131, %v130
  %v146 = vpack.c.b16 %v133, %v132
  %v147 = vpack.c.b16 %v135, %v134
  %v148 = vpack.c.b16 %v137, %v136
  %v149 = vpack.c.b16 %v139, %v138
  %v150 = vpack.c.b16 %v141, %v140
  %v151 = vpack.c.b16 %v143, %v142
  %160 = vmatprep.subr.bf16.mxu0 0
  %161 = vmatpush1.bf16.msra.mxu0 %v151
  %162 = vmatprep.subr.bf16.mxu0 0
  %163 = vmatpush1.bf16.msra.mxu0 %v150
  %164 = vmatprep.subr.bf16.mxu0 0
  %165 = vmatpush1.bf16.msra.mxu0 %v149
  %166 = vmatprep.subr.bf16.mxu0 0
  %167 = vmatpush1.bf16.msra.mxu0 %v148
  %168 = vmatprep.subr.bf16.mxu0 0
  %169 = vmatpush1.bf16.msra.mxu0 %v147
  %170 = vmatprep.subr.bf16.mxu0 0
  %171 = vmatpush1.bf16.msra.mxu0 %v146
  %172 = vmatprep.subr.bf16.mxu0 0
  %173 = vmatpush1.bf16.msra.mxu0 %v145
  %174 = vmatprep.subr.bf16.mxu0 0
  %175 = vmatpush1.bf16.msra.mxu0 %v144
  %176 = vmatprep.subr.bf16.mxu0 0
  %177 = vmatpush2.bf16.msra.mxu0 0
  %178 = vmatprep.subr.bf16.mxu0 0
  %179 = vmatpush2.bf16.msra.mxu0 0
  %180 = vmatprep.subr.bf16.mxu0 0
  %181 = vmatpush2.bf16.msra.mxu0 0
  %182 = vmatprep.subr.bf16.mxu0 0
  %183 = vmatpush2.bf16.msra.mxu0 0
  %184 = vmatprep.subr.bf16.mxu0 0
  %185 = vmatpush2.bf16.msra.mxu0 0
  %186 = vmatprep.subr.bf16.mxu0 0
  %187 = vmatpush2.bf16.msra.mxu0 0
  %188 = vmatprep.subr.bf16.mxu0 0
  %189 = vmatpush2.bf16.msra.mxu0 0
  %190 = vmatprep.subr.bf16.mxu0 0
  %191 = vmatpush2.bf16.msra.mxu0 0
  %192 = vmatprep.mubr.bf16.mxu0 0
  %193 = vmatmul.mubr.bf16.gmra.mxu0 %v88
  %v194 = vpop.f32.mrf.mxu0
  %v195 = vadd.f32 %v110, %v194
  %v196 = vpop.f32.mrf.mxu0
  %v197 = vpop.f32.mrf.mxu0
  %v198 = vpop.f32.mrf.mxu0
  %199 = vdwg.mxu0
  %v200 = vmax.f32 %v195, 0.0
  %v201 = vpack.c.bf16 %v200, %v200
  %v202 = vld [vmem:[%s5] sm:$0xf]
  %v203 = vld [vmem:[%s5 + $0x4] sm:$0xf]
  %v204 = vld [vmem:[%s5 + $0x8] sm:$0xf]
  %v205 = vld [vmem:[%s5 + $0xc] sm:$0xf]
  %v206 = vld [vmem:[%s5 + $0x10] sm:$0xf]
  %v207 = vld [vmem:[%s5 + $0x14] sm:$0xf]
  %v208 = vld [vmem:[%s5 + $0x18] sm:$0xf]
  %v209 = vld [vmem:[%s5 + $0x1c] sm:$0xf]
  %v210 = vld [vmem:[%s5 + $0x20] sm:$0xf]
  %v211 = vld [vmem:[%s5 + $0x24] sm:$0xf]
  %v212 = vld [vmem:[%s5 + $0x28] sm:$0xf]
  %v213 = vld [vmem:[%s5 + $0x2c] sm:$0xf]
  %v214 = vld [vmem:[%s5 + $0x30] sm:$0xf]
  %v215 = vld [vmem:[%s5 + $0x34] sm:$0xf]
  %v216 = vld [vmem:[%s5 + $0x38] sm:$0xf]
  %v217 = vld [vmem:[%s5 + $0x3c] sm:$0xf]
  %v218 = vld [vmem:[%s6] sm:$0x1]
  %v220 = vlaneseq
  %v221 = vshrl.u32 %v220, 7
  %v222 = vsub.s32 0, %v221
  %v223 = vrot.slane %v218, %v222
  %v241 = vunpack.c.l.b16 %v202
  %v242 = vunpack.c.l.b16 %v203
  %v243 = vunpack.c.l.b16 %v204
  %v244 = vunpack.c.l.b16 %v205
  %v245 = vunpack.c.l.b16 %v206
  %v246 = vunpack.c.l.b16 %v207
  %v247 = vunpack.c.l.b16 %v208
  %v248 = vunpack.c.l.b16 %v209
  %v249 = vunpack.c.l.b16 %v210
  %v250 = vunpack.c.l.b16 %v211
  %v251 = vunpack.c.l.b16 %v212
  %v252 = vunpack.c.l.b16 %v213
  %v253 = vunpack.c.l.b16 %v214
  %v254 = vunpack.c.l.b16 %v215
  %v255 = vunpack.c.l.b16 %v216
  %v256 = vunpack.c.l.b16 %v217
  %v257 = vpack.c.b16 %v242, %v241
  %v258 = vpack.c.b16 %v244, %v243
  %v259 = vpack.c.b16 %v246, %v245
  %v260 = vpack.c.b16 %v248, %v247
  %v261 = vpack.c.b16 %v250, %v249
  %v262 = vpack.c.b16 %v252, %v251
  %v263 = vpack.c.b16 %v254, %v253
  %v264 = vpack.c.b16 %v256, %v255
  %273 = vmatprep.subr.bf16.mxu0 0
  %274 = vmatpush1.bf16.msra.mxu0 %v264
  %275 = vmatprep.subr.bf16.mxu0 0
  %276 = vmatpush1.bf16.msra.mxu0 %v263
  %277 = vmatprep.subr.bf16.mxu0 0
  %278 = vmatpush1.bf16.msra.mxu0 %v262
  %279 = vmatprep.subr.bf16.mxu0 0
  %280 = vmatpush1.bf16.msra.mxu0 %v261
  %281 = vmatprep.subr.bf16.mxu0 0
  %282 = vmatpush1.bf16.msra.mxu0 %v260
  %283 = vmatprep.subr.bf16.mxu0 0
  %284 = vmatpush1.bf16.msra.mxu0 %v259
  %285 = vmatprep.subr.bf16.mxu0 0
  %286 = vmatpush1.bf16.msra.mxu0 %v258
  %287 = vmatprep.subr.bf16.mxu0 0
  %288 = vmatpush1.bf16.msra.mxu0 %v257
  %289 = vmatprep.subr.bf16.mxu0 0
  %290 = vmatpush2.bf16.msra.mxu0 0
  %291 = vmatprep.subr.bf16.mxu0 0
  %292 = vmatpush2.bf16.msra.mxu0 0
  %293 = vmatprep.subr.bf16.mxu0 0
  %294 = vmatpush2.bf16.msra.mxu0 0
  %295 = vmatprep.subr.bf16.mxu0 0
  %296 = vmatpush2.bf16.msra.mxu0 0
  %297 = vmatprep.subr.bf16.mxu0 0
  %298 = vmatpush2.bf16.msra.mxu0 0
  %299 = vmatprep.subr.bf16.mxu0 0
  %300 = vmatpush2.bf16.msra.mxu0 0
  %301 = vmatprep.subr.bf16.mxu0 0
  %302 = vmatpush2.bf16.msra.mxu0 0
  %303 = vmatprep.subr.bf16.mxu0 0
  %304 = vmatpush2.bf16.msra.mxu0 0
  %305 = vmatprep.mubr.bf16.mxu0 0
  %306 = vmatmul.mubr.bf16.gmra.mxu0 %v201
  %v307 = vpop.f32.mrf.mxu0
  %v308 = vadd.f32 %v223, %v307
  %v309 = vpop.f32.mrf.mxu0
  %v310 = vpop.f32.mrf.mxu0
  %v311 = vpop.f32.mrf.mxu0
  %312 = vdwg.mxu0
  %313 = vst [vmem:[%s7] sm:$0xff] %v308
  // Predicated region
  $region30: #{mlp_forward.1} parent=0 // pred_check
    _
  $region31: #{mlp_forward.1} parent=0 // pred_check_branch
    %315 = sbr.rel (0) target = $region33
  $region32: #{mlp_forward.1} parent=0 // pred_region
    _
  $region33: #{mlp_forward.1} parent=0 // pred_fallthru
    _
  // Predicated region
  $region34: #{mlp_forward.1} parent=0 // pred_check
    _
  $region35: #{mlp_forward.1} parent=0 // pred_check_branch
    %317 = sbr.rel (0) target = $region37
  $region36: #{mlp_forward.1} parent=0 // pred_region
    _
  $region37: #{mlp_forward.1} parent=0 // pred_fallthru
    _

</llo_original>
